<compile_context>
chip_gen: v5e
topology: v5e:2x2
jax: 0.10.0
libtpu: 0.0.40
codegen_flags: <defaults>
</compile_context>

<pallas_src>
import jax
import jax.numpy as jnp
from jax.experimental import pallas as pl
from jax.experimental.pallas import tpu as pltpu


def _preproc_kernel(x_ref, sb_ref, o_ref):
    # x_ref:  (TM, TN) input tile
    # sb_ref: (TM, 2)  f32 per-row [scale, bias] = [1/std, -mean/std]
    # o_ref:  (TM, TN) output tile
    x = x_ref[...].astype(jnp.float32)
    scale = sb_ref[:, 0:1]
    bias = sb_ref[:, 1:2]
    o_ref[...] = (x * scale + bias).astype(o_ref.dtype)


def _round_up(n, m):
    return ((n + m - 1) // m) * m


_TARGET_BLOCK_BYTES = 4 * 1024 * 1024  # ~4 MiB input tile per grid step
_MAX_LANE_TILE = 8192                  # 128-multiple cap (v7x-friendly)


def _pick_tiles(rows, cols, in_itemsize):
    """Tile sizes: ragged-friendly, ~4 MiB blocks, (8,128)-legal shapes."""
    # Sublane tile: 128 when there are enough rows, else the full extent
    # (block_shape equal to the full array dim is always layout-legal).
    tm = min(rows, 128)
    if cols <= 128:
        return tm, cols
    # Lane tile: target ~_TARGET_BLOCK_BYTES per input block, 128-aligned.
    tn = (_TARGET_BLOCK_BYTES // max(tm * in_itemsize, 1)) // 128 * 128
    tn = int(max(128, min(tn, _MAX_LANE_TILE)))
    if tn >= cols:
        tn = cols  # single full-extent lane block
        # v7x has 2 TensorCores: avoid a degenerate (1,1) grid when wide enough.
        if tm >= rows and cols >= 256:
            tn = _round_up(pl.cdiv(cols, 2), 128)
    return tm, tn


def preproc_layer(x, mean, std, out_dtype=None):
    """(x - mean) / std with per-channel mean/std (NCHW, matches PyTorch).

    Args:
      x:    (B, C, H, W) array.
      mean: (C,) float array.
      std:  (C,) float array (must be nonzero, same as the PyTorch module).
      out_dtype: optional output dtype (e.g. jnp.bfloat16 to cut HBM bytes).
    Returns:
      (B, C, H, W) normalized array.
    """
    B, C, H, W = x.shape
    if out_dtype is None:
        out_dtype = x.dtype if jnp.issubdtype(x.dtype, jnp.floating) else jnp.float32

    # Fold the divide: (x - m) / s == x * (1/s) + (-m/s), computed once in f32.
    scale_c = 1.0 / std.astype(jnp.float32)           # (C,)
    bias_c = (-mean.astype(jnp.float32)) * scale_c    # (C,)

    # Pick a dense 2-D layout. Default: rows = B*C, cols = H*W. If B*C is
    # smaller than a sublane group but W is lane-wide, split rows per (c, h).
    if B * C < 8 and W >= 128:
        rows, cols = B * C * H, W
        scale_r = jnp.tile(jnp.repeat(scale_c, H), B)   # row = (b*C + c)*H + h
        bias_r = jnp.tile(jnp.repeat(bias_c, H), B)
    else:
        rows, cols = B * C, H * W
        scale_r = jnp.tile(scale_c, B)                  # row = b*C + c
        bias_r = jnp.tile(bias_c, B)

    sb = jnp.stack([scale_r, bias_r], axis=1)           # (rows, 2) f32
    x2 = x.reshape(rows, cols)

    in_itemsize = jnp.dtype(x.dtype).itemsize
    out_itemsize = jnp.dtype(out_dtype).itemsize
    tm, tn = _pick_tiles(rows, cols, in_itemsize)
    grid = (pl.cdiv(rows, tm), pl.cdiv(cols, tn))

    cost = pl.CostEstimate(
        flops=2 * rows * cols,
        transcendentals=0,
        bytes_accessed=rows * cols * (in_itemsize + out_itemsize) + rows * 2 * 4,
    )

    out = pl.pallas_call(
        _preproc_kernel,
        out_shape=jax.ShapeDtypeStruct((rows, cols), out_dtype),
        grid_spec=pltpu.PrefetchScalarGridSpec(
            num_scalar_prefetch=0,
            grid=grid,
            in_specs=[
                pl.BlockSpec((tm, tn), lambda i, j: (i, j)),
                # Row axis is the outer grid dim, so this block index is
                # constant across the inner lane loop -> no re-DMA.
                pl.BlockSpec((tm, 2), lambda i, j: (i, 0)),
            ],
            out_specs=pl.BlockSpec((tm, tn), lambda i, j: (i, j)),
        ),
        compiler_params=pltpu.CompilerParams(
            dimension_semantics=("parallel", "parallel"),
            vmem_limit_bytes=32 * 1024 * 1024,
        ),
        cost_estimate=cost,
    )(x2, sb)

    return out.reshape(B, C, H, W)


def _ref(x, mean, std):
    return (x - mean[None, :, None, None]) / std[None, :, None, None]


if __name__ == "__main__":
    key = jax.random.PRNGKey(0)
    k0, k1, k2, k3 = jax.random.split(key, 4)

    mean4 = jnp.array([0.485, 0.456, 0.406, 0.5], dtype=jnp.float32)
    std4 = jnp.array([0.229, 0.224, 0.225, 0.25], dtype=jnp.float32)
    mean3 = jnp.array([0.485, 0.456, 0.406], dtype=jnp.float32)
    std3 = jnp.array([0.229, 0.224, 0.225], dtype=jnp.float32)

    # Case 1: primary NCHW batch (C=4 -> B*C multiple of 8); exercises the
    # 2-way lane split path.
    B, C, H, W = 2, 4, 16, 16
    x = jax.random.normal(k0, (B, C, H, W), dtype=jnp.float32)
    out = jax.block_until_ready(preproc_layer(x, mean4, std4))
    assert out.shape == (B, C, H, W) and out.dtype == x.dtype
    assert jnp.allclose(out, _ref(x, mean4, std4), atol=1e-5, rtol=1e-5)

    # Case 2: C=3, small batch, narrow W -> (B*C, H*W) layout with full-extent
    # sublane block (rows=3).
    x_b = jax.random.normal(k1, (1, 3, 32, 32), dtype=jnp.float32)
    out_b = jax.block_until_ready(preproc_layer(x_b, mean3, std3))
    assert jnp.allclose(out_b, _ref(x_b, mean3, std3), atol=1e-5, rtol=1e-5)

    # Case 3: C=3 with lane-wide W -> (B*C*H, W) relayout path.
    x_c = jax.random.normal(k2, (1, 3, 8, 128), dtype=jnp.float32)
    out_c = jax.block_until_ready(preproc_layer(x_c, mean3, std3))
    assert jnp.allclose(out_c, _ref(x_c, mean3, std3), atol=1e-5, rtol=1e-5)

    # Case 4: non-power-of-two spatial extent -> ragged last lane block.
    x_d = jax.random.normal(k3, (2, 4, 16, 20), dtype=jnp.float32)
    out_d = jax.block_until_ready(preproc_layer(x_d, mean4, std4))
    assert jnp.allclose(out_d, _ref(x_d, mean4, std4), atol=1e-5, rtol=1e-5)

    print("KERNEL_OK")
</pallas_src>

<mosaic_0001>
module attributes {stable_mosaic.version = 11 : i64} {
  func.func @_preproc_kernel(%arg0: i32, %arg1: i32, %arg2: memref<8x128xf32, #tpu.memory_space<vmem>>, %arg3: memref<8x2xf32, #tpu.memory_space<vmem>>, %arg4: memref<8x128xf32, #tpu.memory_space<vmem>>) attributes {dimension_semantics = [#tpu.dimension_semantics<parallel>, #tpu.dimension_semantics<parallel>], iteration_bounds = array<i64: 1, 2>, scalar_prefetch = 0 : i64, scratch_operands = 0 : i64, tpu.core_type = #tpu.core_type<tc>, window_params = [{transform_indices = @transform_0, window_bounds = array<i64: 8, 128>}, {transform_indices = @transform_1, window_bounds = array<i64: 8, 2>}, {transform_indices = @transform_2, window_bounds = array<i64: 8, 128>}]} {
    %c0 = arith.constant 0 : index
    %c0_0 = arith.constant 0 : index
    %0 = vector.load %arg2[%c0, %c0_0] : memref<8x128xf32, #tpu.memory_space<vmem>>, vector<8x128xf32>
    %c0_1 = arith.constant 0 : index
    %c0_2 = arith.constant 0 : index
    %1 = vector.load %arg3[%c0_1, %c0_2] : memref<8x2xf32, #tpu.memory_space<vmem>>, vector<8x1xf32>
    %c0_3 = arith.constant 0 : index
    %c1 = arith.constant 1 : index
    %2 = vector.load %arg3[%c0_3, %c1] : memref<8x2xf32, #tpu.memory_space<vmem>>, vector<8x1xf32>
    %3 = vector.broadcast %1 : vector<8x1xf32> to vector<8x128xf32>
    %4 = arith.mulf %0, %3 : vector<8x128xf32>
    %5 = vector.broadcast %2 : vector<8x1xf32> to vector<8x128xf32>
    %6 = arith.addf %4, %5 : vector<8x128xf32>
    %c0_4 = arith.constant 0 : index
    %c0_5 = arith.constant 0 : index
    %7 = vector.load %arg4[%c0_4, %c0_5] : memref<8x128xf32, #tpu.memory_space<vmem>>, vector<8x128xf32>
    tpu.vector_store %arg4[%c0_4, %c0_5], %6 {strides = array<i32>} : memref<8x128xf32, #tpu.memory_space<vmem>>, vector<8x128xf32>,
    return
  }
  func.func @transform_0(%arg0: i32, %arg1: i32) -> (i32, i32) {
    %c0_i32 = arith.constant 0 : i32
    return %arg0, %arg1 : i32, i32
  }
  func.func @transform_1(%arg0: i32, %arg1: i32) -> (i32, i32) {
    %c0_i32 = arith.constant 0 : i32
    %c0_i32_0 = arith.constant 0 : i32
    return %arg0, %c0_i32 : i32, i32
  }
  func.func @transform_2(%arg0: i32, %arg1: i32) -> (i32, i32) {
    %c0_i32 = arith.constant 0 : i32
    return %arg0, %arg1 : i32, i32
  }
}

</mosaic_0001>

<llo_original>
// kernel: tpu_custom_call.1
$region0: #{tpu_custom_call.1}
  #allocation0 [shape = 'u32[]', space=smem, size = 0x4, offset = 0x4, fixed_abs, tag = 'smem constant byte address 0x4 - core index']
  #allocation1 [shape = 'u32[72,128]{1,0:T(1,128)}', space=vmem, size = 0x9000, scoped, tag = 'internal scratch']
  %s0 = inlined_call_operand.hbm [shape: f32[8,256], index: 0, kind: input, shape index: {}]
  %s1 = inlined_call_operand.vmem [shape: f32[8,2], index: 1, kind: input, shape index: {}]
  %s2 = inlined_call_operand.hbm [shape: f32[8,256], index: 2, kind: output, shape index: {}]
  %s3 = sld [smem:[#allocation0]]
  $region45: #{tpu_custom_call.1} parent=0
    _
  %s5 = ssub.s32 1, %s3
  %s6 = scalar_select 0, %s5, %s3
  $region1: #{tpu_custom_call.1} parent=0
    #allocation2 [shape = 'u8[8192]{0}', space=vmem, size = 0x2000, scoped, tag = 'input window, operand 0']
    #allocation3 [shape = 's32[2]{0}', space=sflag, size = 0x8, scoped, tag = 'scoped memory for tpu_custom_call.1']
    #allocation4 [shape = 's32[2]{0}', space=sflag, size = 0x8, scoped, tag = 'scoped memory for tpu_custom_call.1']
    #allocation5 [shape = 'u8[8192]{0}', space=vmem, size = 0x2000, scoped, tag = 'output window, operand 0']
    %7 = vsyncpa [#allocation3], 0
    %s8 = scalar_lea.sflag [#allocation3], 1
    %9 = vsyncpa %s8, 0
    %10 = vsyncpa [#allocation4], 0
    %s11 = scalar_lea.sflag [#allocation4], 1
    %12 = vsyncpa %s11, 0
    loop: start=0, step=1, limit=4
    $region2: #{tpu_custom_call.1} parent=1 // loop_pre_header
      _
    $region3: #{tpu_custom_call.1} parent=1 // loop_header
      %s14 = sphi 0, %s18
      %p15 = scmp.ge.s32.totalorder %s14, 4
      %s21 = sphi 0, %s33
      %s22 = sphi 0, %s29
      %s23 = sphi 0, %s21
      %s24 = sphi 0, %s22
      %s25 = sphi 0, %s23
      %s26 = sphi 0, %s24
      %s38 = sphi 0, %s40
      %s41 = sphi 0, %s38
      %s42 = sphi 0, %s41
      %s58 = sphi 0, %s42
      %s64 = sphi 0, %s66
      %s67 = sphi 0, %s64
      %s68 = sphi 0, %s67
      %s84 = sphi 0, %s68
      %s92 = sphi 0, %s94
      %s95 = sphi 0, %s92
      %s96 = sphi 0, %s95
      %s112 = sphi 0, %s96
    $region4: #{tpu_custom_call.1} parent=1 // loop_header_branch
      %17 = sbr.rel (%p15) target = $region8
    $region5: #{tpu_custom_call.1} parent=1 // loop_body
      %s19 = ssub.s32 %s14, 1
      %s20 = ssub.s32 %s14, 2
      %s27 = sadd.s32 1, %s22
      %p28 = scmp.ge.s32.totalorder %s27, 2
      %s29 = scalar_select %p28, 0, %s27
      %s30 = sadd.s32 1, %s21
      %s31 = scalar_select %p28, %s30, %s21
      %p32 = scmp.ge.s32.totalorder %s31, 1
      %s33 = scalar_select %p32, 0, %s31
      %s34 = ssub.s32 %s21, %s33
      %s35 = ssub.s32 %s22, %s29
      %s36 = sor.u32 %s34, %s35
      %p37 = scmp.eq.s32.totalorder %s36, 0
      %s39 = sadd.s32 %s38, 1
      %s40 = scalar_select %p37, %s38, %s39
      %p43 = pneg %p37
      %p44 = scmp.eq.s32.totalorder %s14, 1
      %p45 = por %p43, %p44
      %p46 = scmp.ne.s32.totalorder %s38, %s41
      %p47 = scmp.eq.s32.totalorder %s14, 0
      %p48 = por %p46, %p47
      %p49 = scmp.ne.s32.totalorder %s38, %s41
      %p50 = scmp.eq.s32.totalorder %s19, 1
      %p51 = por %p49, %p50
      %p52 = scmp.ne.s32.totalorder %s41, %s42
      %p53 = scmp.eq.s32.totalorder %s19, 0
      %p54 = por %p52, %p53
      %p55 = scmp.ne.s32.totalorder %s41, %s42
      %p56 = scmp.eq.s32.totalorder %s20, 1
      %p57 = por %p55, %p56
      %p59 = scmp.ne.s32.totalorder %s42, %s58
      %p60 = scmp.eq.s32.totalorder %s20, 0
      %p61 = por %p59, %p60
      %s62 = ssub.s32 %s21, %s33
      %p63 = scmp.eq.s32.totalorder %s62, 0
      %s65 = sadd.s32 %s64, 1
      %s66 = scalar_select %p63, %s64, %s65
      %p69 = pneg %p63
      %p70 = scmp.eq.s32.totalorder %s14, 1
      %p71 = por %p69, %p70
      %p72 = scmp.ne.s32.totalorder %s64, %s67
      %p73 = scmp.eq.s32.totalorder %s14, 0
      %p74 = por %p72, %p73
      %p75 = scmp.ne.s32.totalorder %s64, %s67
      %p76 = scmp.eq.s32.totalorder %s19, 1
      %p77 = por %p75, %p76
      %p78 = scmp.ne.s32.totalorder %s67, %s68
      %p79 = scmp.eq.s32.totalorder %s19, 0
      %p80 = por %p78, %p79
      %p81 = scmp.ne.s32.totalorder %s67, %s68
      %p82 = scmp.eq.s32.totalorder %s20, 1
      %p83 = por %p81, %p82
      %p85 = scmp.ne.s32.totalorder %s68, %s84
      %p86 = scmp.eq.s32.totalorder %s20, 0
      %p87 = por %p85, %p86
      %s88 = ssub.s32 %s21, %s33
      %s89 = ssub.s32 %s22, %s29
      %s90 = sor.u32 %s88, %s89
      %p91 = scmp.eq.s32.totalorder %s90, 0
      %s93 = sadd.s32 %s92, 1
      %s94 = scalar_select %p91, %s92, %s93
      %p97 = pneg %p91
      %p98 = scmp.eq.s32.totalorder %s14, 1
      %p99 = por %p97, %p98
      %p100 = scmp.ne.s32.totalorder %s92, %s95
      %p101 = scmp.eq.s32.totalorder %s14, 0
      %p102 = por %p100, %p101
      %p103 = scmp.ne.s32.totalorder %s92, %s95
      %p104 = scmp.eq.s32.totalorder %s19, 1
      %p105 = por %p103, %p104
      %p106 = scmp.ne.s32.totalorder %s95, %s96
      %p107 = scmp.eq.s32.totalorder %s19, 0
      %p108 = por %p106, %p107
      %p109 = scmp.ne.s32.totalorder %s95, %s96
      %p110 = scmp.eq.s32.totalorder %s20, 1
      %p111 = por %p109, %p110
      %p113 = scmp.ne.s32.totalorder %s96, %s112
      %p114 = scmp.eq.s32.totalorder %s20, 0
      %p115 = por %p113, %p114
      %p116 = scmp.le.s32.totalorder 1, %s14
      %p117 = scmp.lt.s32.totalorder %s14, 3
      %p118 = pnand %p116, %p117
      %p119 = pneg %p118
      // Predicated region
      $region9: #{tpu_custom_call.1} parent=5 // pred_check
        _
      $region10: #{tpu_custom_call.1} parent=5 // pred_check_branch
        %121 = sbr.rel (%p118) target = $region12
      $region11: #{tpu_custom_call.1} parent=5 // pred_region
        %s122 = ssub.s32 %s14, 1
        // Predicated region
        $region13: #{tpu_custom_call.1} parent=11 // pred_check
          %p123 = pneg %p80
        $region14: #{tpu_custom_call.1} parent=11 // pred_check_branch
          %125 = sbr.rel (%p123) target = $region16
        $region15: #{tpu_custom_call.1} parent=11 // pred_region
          %p126 = scmp.lt.s32.totalorder %s23, 0
          %s127 = scalar_select %p126, %s23, 0
          %s128 = smul.addr %s127, 8
          %s129 = scalar_lea.vmem %s1, %s128
        $region16: #{tpu_custom_call.1} parent=11 // pred_fallthru
          _
      $region12: #{tpu_custom_call.1} parent=5 // pred_fallthru
        _
      %p130 = scmp.lt.s32.totalorder %s14, 2
      // Predicated region
      $region17: #{tpu_custom_call.1} parent=5 // pred_check
        %p131 = pneg %p130
      $region18: #{tpu_custom_call.1} parent=5 // pred_check_branch
        %133 = sbr.rel (%p131) target = $region20
      $region19: #{tpu_custom_call.1} parent=5 // pred_region
        // Predicated region
        $region21: #{tpu_custom_call.1} parent=19 // pred_check
          %p134 = pneg %p48
        $region22: #{tpu_custom_call.1} parent=19 // pred_check_branch
          %136 = sbr.rel (%p134) target = $region24
        $region23: #{tpu_custom_call.1} parent=19 // pred_region
          %s137 = sand.u32 %s38, 1
          %s138 = scalar_lea.sflag [#allocation3], %s137
          %s139 = sand.u32 %s38, 1
          %s140 = smul.addr %s139, 8
          %s141 = scalar_lea.vmem [#allocation2], %s140
          %143 = vsyncadd %s138, 0
          %s144 = smul.addr %s21, 2
          %s145 = sadd.s32 %s22, %s144
          %s146 = smul.addr %s145, 8
          %s147 = scalar_lea.hbm %s0, %s146
          %s149 = sshll.u32 %s147, 4
          %s150 = int_to_ptr.hbm [resolvable:$true] %s149
          %s151 = sshll.u32 %s141, 4
          %s152 = int_to_ptr.vmem [resolvable:$true] %s151
          %154 = dma.hbm_to_vmem [thread:$0]  %s150, 128, %s152, %s138
        $region24: #{tpu_custom_call.1} parent=19 // pred_fallthru
          _
      $region20: #{tpu_custom_call.1} parent=5 // pred_fallthru
        _
      %p155 = scmp.le.s32.totalorder 1, %s14
      %p156 = scmp.lt.s32.totalorder %s14, 3
      %p157 = pnand %p155, %p156
      %p158 = pneg %p157
      // Predicated region
      $region25: #{tpu_custom_call.1} parent=5 // pred_check
        _
      $region26: #{tpu_custom_call.1} parent=5 // pred_check_branch
        %160 = sbr.rel (%p157) target = $region28
      $region27: #{tpu_custom_call.1} parent=5 // pred_region
        %s161 = ssub.s32 %s14, 1
        %s162 = sand.u32 %s41, 1
        %s163 = scalar_lea.sflag [#allocation3], %s162
        %s164 = sand.u32 %s41, 1
        %s165 = smul.addr %s164, 8
        %s166 = scalar_lea.vmem [#allocation2], %s165
        // Predicated region
        $region29: #{tpu_custom_call.1} parent=27 // pred_check
          %p167 = pneg %p54
        $region30: #{tpu_custom_call.1} parent=27 // pred_check_branch
          %169 = sbr.rel (%p167) target = $region32
        $region31: #{tpu_custom_call.1} parent=27 // pred_region
          %171 = dma.done %s163, 128
        $region32: #{tpu_custom_call.1} parent=27 // pred_fallthru
          _
        %s172 = sand.u32 %s41, 1
        %s173 = scalar_lea.sflag [#allocation3], %s172
        %s174 = sand.u32 %s41, 1
        %s175 = smul.addr %s174, 8
        %s176 = scalar_lea.vmem [#allocation2], %s175
        %p177 = pneg %p54
        %p178 = pneg %p51
        %p179 = scmp.lt.s32.totalorder %s23, 0
        %s180 = scalar_select %p179, %s23, 0
        %s181 = smul.addr %s180, 8
        %s182 = scalar_lea.vmem %s1, %s181
        %p183 = pneg %p80
        %p184 = pneg %p77
        %p185 = pneg %p108
        %p186 = pneg %p105
        %s187 = sand.u32 %s95, 1
        %s188 = scalar_lea.sflag [#allocation4], %s187
        %s189 = sand.u32 %s95, 1
        %s190 = smul.addr %s189, 8
        %s191 = scalar_lea.vmem [#allocation5], %s190
        %p192 = scmp.lt.s32.totalorder %s23, 0
        %s193 = scalar_select %p192, %s23, 0
        %s194 = smul.addr %s193, 8
        %s195 = scalar_lea.vmem %s1, %s194
        %v196 = vld [vmem:[%s166] sm:$0xff]
        %v197 = vld [vmem:[%s195] sm:$0xff]
        %199 = vset.pattern.permute.xlu0 0
        %200 = vperm.xlu0 %199, %v197
        %v201 = vpop.permute.xlu0 %200
        %v203 = vmul.f32 %v196, %v201
        %204 = vset.pattern.permute.xlu0 1
        %205 = vperm.xlu0 %204, %v197
        %v206 = vpop.permute.xlu0 %205
        %v208 = vadd.f32 %v203, %v206
        %209 = vst [vmem:[%s191] sm:$0xff] %v208
        %s210 = sand.u32 %s95, 1
        %s211 = scalar_lea.sflag [#allocation4], %s210
        %s212 = sand.u32 %s95, 1
        %s213 = smul.addr %s212, 8
        %s214 = scalar_lea.vmem [#allocation5], %s213
        // Predicated region
        $region33: #{tpu_custom_call.1} parent=27 // pred_check
          %p215 = pneg %p105
        $region34: #{tpu_custom_call.1} parent=27 // pred_check_branch
          %217 = sbr.rel (%p215) target = $region36
        $region35: #{tpu_custom_call.1} parent=27 // pred_region
          %219 = vsyncadd %s211, 0
          %s220 = smul.addr %s23, 2
          %s221 = sadd.s32 %s24, %s220
          %s222 = smul.addr %s221, 8
          %s223 = scalar_lea.hbm %s2, %s222
          %s225 = sshll.u32 %s214, 4
          %s226 = int_to_ptr.vmem [resolvable:$true] %s225
          %s227 = sshll.u32 %s223, 4
          %s228 = int_to_ptr.hbm [resolvable:$true] %s227
          %230 = dma.vmem_to_hbm [thread:$0]  %s226, 128, %s228, %s211
        $region36: #{tpu_custom_call.1} parent=27 // pred_fallthru
          _
      $region28: #{tpu_custom_call.1} parent=5 // pred_fallthru
        _
      %p231 = scmp.le.s32.totalorder 2, %s14
      // Predicated region
      $region37: #{tpu_custom_call.1} parent=5 // pred_check
        %p232 = pneg %p231
      $region38: #{tpu_custom_call.1} parent=5 // pred_check_branch
        %234 = sbr.rel (%p232) target = $region40
      $region39: #{tpu_custom_call.1} parent=5 // pred_region
        %s235 = ssub.s32 %s14, 2
        // Predicated region
        $region41: #{tpu_custom_call.1} parent=39 // pred_check
          %p236 = pneg %p111
        $region42: #{tpu_custom_call.1} parent=39 // pred_check_branch
          %238 = sbr.rel (%p236) target = $region44
        $region43: #{tpu_custom_call.1} parent=39 // pred_region
          %s239 = sand.u32 %s96, 1
          %s240 = scalar_lea.sflag [#allocation4], %s239
          %s241 = sand.u32 %s96, 1
          %s242 = smul.addr %s241, 8
          %s243 = scalar_lea.vmem [#allocation5], %s242
          %245 = dma.done %s240, 128
        $region44: #{tpu_custom_call.1} parent=39 // pred_fallthru
          _
      $region40: #{tpu_custom_call.1} parent=5 // pred_fallthru
        _
    $region6: #{tpu_custom_call.1} parent=1 // loop_footer
      %s18 = sadd.s32 1, %s14
    $region7: #{tpu_custom_call.1} parent=1 // loop_footer_branch
      %13 = sbr.rel target = $region3
    $region8: #{tpu_custom_call.1} parent=1 // loop_exit
      _
    %246 = vsyncpa [#allocation3], 1
    %s247 = scalar_lea.sflag [#allocation3], 1
    %248 = vsyncpa %s247, 1
    %249 = vsyncpa [#allocation4], 1
    %s250 = scalar_lea.sflag [#allocation4], 1
    %251 = vsyncpa %s250, 1

</llo_original>
